<compile_context>
chip_gen: v7x
topology: tpu7x:2x2x1
jax: 0.10.0
libtpu: 0.0.40
codegen_flags: <defaults>
</compile_context>

<pallas_src>
import functools

import jax
import jax.numpy as jnp
from jax.experimental import pallas as pl
from jax.experimental.pallas import tpu as pltpu


def _round_up(x, m):
    return ((x + m - 1) // m) * m


def _vmem_budget_bytes():
    """Usable per-core VMEM budget (device capacity minus headroom)."""
    cap = 64 * 2 ** 20                     # conservative default: v7x 64 MiB/TC
    try:
        info = pltpu.get_tpu_info()
        cap = int(getattr(info, "vmem_capacity_bytes", cap)) or cap
    except Exception:
        pass
    return max(cap - 16 * 2 ** 20, cap // 2)   # headroom for Mosaic scratch


def _choose_tile_m(n_rows, requested, align=128):
    """MXU-aligned row tile (multiple of 128), biased toward an even number of
    row tiles so v7x's two TensorCores split the 'parallel' axis evenly."""
    if n_rows <= align:
        return max(8, _round_up(n_rows, 8))
    cap = n_rows if n_rows % align == 0 else _round_up(n_rows, align)
    tm = min(_round_up(requested, align), cap)
    n_tiles = -(-n_rows // tm)
    if n_tiles > 1 and n_tiles % 2 == 1:
        alt = _round_up(-(-n_rows // (n_tiles + 1)), align)
        if alt >= align and (-(-n_rows // alt)) % 2 == 0:
            tm = alt
    return tm


def _spec(shape, index_map, single_buffer=False):
    """BlockSpec; grid-invariant operands request a single pipeline buffer."""
    if single_buffer and hasattr(pl, "Buffered"):
        try:
            return pl.BlockSpec(shape, index_map, pipeline_mode=pl.Buffered(1))
        except TypeError:
            pass
    return pl.BlockSpec(shape, index_map)


def _layer_norm_store(h, gamma, beta, o_ref, eps):
    # Single reduction pass: biased var = E[h^2] - mean^2 (matches nn.LayerNorm).
    mean = jnp.mean(h, axis=-1, keepdims=True)
    mean_sq = jnp.mean(h * h, axis=-1, keepdims=True)
    var = jnp.maximum(mean_sq - mean * mean, 0.0)
    inv = jax.lax.rsqrt(var + eps)
    # gamma folded into the rsqrt scale.
    o_ref[...] = ((h - mean) * (inv * gamma) + beta).astype(o_ref.dtype)


def _bert_output_fused_kernel(x_ref, w_ref, res_ref, pkt_ref, o_ref, *, eps):
    """Resident-weight path: single K step, no f32 scratch."""
    bias = pkt_ref[0:1, :].astype(jnp.float32)
    gamma = pkt_ref[1:2, :].astype(jnp.float32)
    beta = pkt_ref[2:3, :].astype(jnp.float32)
    h = jnp.dot(x_ref[...], w_ref[...], preferred_element_type=jnp.float32)
    # TODO(synk): training-mode dropout (hidden_dropout_prob) not implemented; eval identity.
    # dense bias folded into the residual add.
    h = h + (res_ref[...].astype(jnp.float32) + bias)
    _layer_norm_store(h, gamma, beta, o_ref, eps)


def _bert_output_ktiled_kernel(x_ref, w_ref, res_ref, pkt_ref, o_ref, acc_ref, *, eps):
    """K-tiled path: f32 VMEM accumulator over the intermediate dimension."""
    k = pl.program_id(1)
    part = jnp.dot(x_ref[...], w_ref[...], preferred_element_type=jnp.float32)

    @pl.when(k == 0)
    def _():
        acc_ref[...] = part                    # direct write: no zero-fill pass

    @pl.when(k > 0)
    def _():
        acc_ref[...] += part

    @pl.when(k == pl.num_programs(1) - 1)
    def _():
        bias = pkt_ref[0:1, :].astype(jnp.float32)
        gamma = pkt_ref[1:2, :].astype(jnp.float32)
        beta = pkt_ref[2:3, :].astype(jnp.float32)
        acc_ref[...] += res_ref[...].astype(jnp.float32) + bias
        _layer_norm_store(acc_ref[...], gamma, beta, o_ref, eps)


def bert_output_forward(hidden_states, input_tensor, params, *, eps=1e-12,
                        tile_m=512, tile_k=None):
    """BertOutput forward: dense -> dropout(eval) -> +residual -> LayerNorm.

    hidden_states: [B, S, I], input_tensor: [B, S, H] -> [B, S, H].
    tile_k=None (default): keep the full (I, H) weight VMEM-resident whenever it
    fits the device budget (single K step); otherwise K-tile the reduction.
    """
    B, S, I = hidden_states.shape
    H = input_tensor.shape[-1]
    N = B * S
    x2 = hidden_states.reshape(N, I)
    r2 = input_tensor.reshape(N, H)
    w = params["dense_w"]                                    # (I, H)
    out_dtype = hidden_states.dtype
    budget = _vmem_budget_bytes()

    # ---- weight residency / K tiling --------------------------------------
    w_bytes = I * H * w.dtype.itemsize
    if tile_k is not None:
        tk = min(int(tile_k), I)
    elif 2 * w_bytes <= budget // 2:
        tk = I                      # resident: weight streamed from HBM once
    else:
        tk = None
        for cand in (2048, 1024, 512, 256, 128):
            if cand < I and I % cand == 0 and 2 * cand * H * w.dtype.itemsize <= budget // 2:
                tk = cand
                break
        if tk is None:
            tk = min(I, 512)
    resident = tk >= I

    # K zero-padding only when the K tile does not divide I (rare for real BERT
    # sizes); both operands padded to keep the reduction NaN-free.  Rows are
    # never padded: the ragged last row tile uses Pallas OOB masking.
    I_pad = I
    if not resident and I % tk != 0:
        I_pad = _round_up(I, tk)
        x2 = jnp.pad(x2, ((0, 0), (0, I_pad - I)))
        w = jnp.pad(w, ((0, I_pad - I), (0, 0)))
    nk = 1 if resident else I_pad // tk

    # ---- row tiling ---------------------------------------------------------
    tm = _choose_tile_m(N, tile_m)

    # Packed [dense_bias; ln_gamma; ln_beta]: one DMA instead of three.
    pkt = jnp.stack([params["dense_b"], params["ln_w"], params["ln_b"]], axis=0)

    def _estimate(tm_):
        # Conservative (double-buffered everywhere) footprint.
        est = (2 * tm_ * (I_pad if resident else tk) * x2.dtype.itemsize
               + 2 * (I_pad if resident else tk) * H * w.dtype.itemsize
               + 2 * tm_ * H * r2.dtype.itemsize
               + 2 * tm_ * H * jnp.dtype(out_dtype).itemsize
               + 2 * _round_up(3, 8) * H * pkt.dtype.itemsize)
        if nk > 1:
            est += tm_ * H * 4                 # f32 accumulator scratch
        return est

    while tm > 128 and int(_estimate(tm) * 1.25) > budget:
        tm = max(128, _round_up(tm // 2, 128))
    est = _estimate(tm)
    vmem_limit = int(min(max(int(est * 1.25), 16 * 2 ** 20), budget))
    grid_m = pl.cdiv(N, tm)

    def _call(single_buffer):
        if resident:
            grid = (grid_m,)
            in_specs = [
                _spec((tm, I_pad), lambda i: (i, 0)),                              # x rows
                _spec((I_pad, H), lambda i: (0, 0), single_buffer=single_buffer),  # weight
                _spec((tm, H), lambda i: (i, 0)),                                  # residual
                _spec((3, H), lambda i: (0, 0), single_buffer=single_buffer),      # bias/g/b
            ]
            out_specs = pl.BlockSpec((tm, H), lambda i: (i, 0))
            scratch = ()
            kernel = functools.partial(_bert_output_fused_kernel, eps=eps)
            dims = ("parallel",)
        else:
            grid = (grid_m, nk)
            in_specs = [
                _spec((tm, tk), lambda i, k: (i, k)),
                _spec((tk, H), lambda i, k: (k, 0)),
                _spec((tm, H), lambda i, k: (i, 0)),
                _spec((3, H), lambda i, k: (0, 0), single_buffer=single_buffer),
            ]
            out_specs = pl.BlockSpec((tm, H), lambda i, k: (i, 0))
            scratch = (pltpu.VMEM((tm, H), jnp.float32),)
            kernel = functools.partial(_bert_output_ktiled_kernel, eps=eps)
            dims = ("parallel", "arbitrary")

        return pl.pallas_call(
            kernel,
            out_shape=jax.ShapeDtypeStruct((N, H), out_dtype),
            grid_spec=pltpu.PrefetchScalarGridSpec(
                num_scalar_prefetch=0,
                grid=grid,
                in_specs=in_specs,
                out_specs=out_specs,
                scratch_shapes=scratch,
            ),
            compiler_params=pltpu.CompilerParams(
                dimension_semantics=dims, vmem_limit_bytes=vmem_limit),
        )(x2, w, r2, pkt)

    try:
        out2 = _call(True)
    except Exception:
        # pl.Buffered(1) not supported by this jax/Mosaic build: fall back to
        # default double-buffering (identical numerics).
        out2 = _call(False)

    return out2.reshape(B, S, H)


def init_params(key, intermediate_size, hidden_out, dtype=jnp.float32):
    k1, k2 = jax.random.split(key)
    # nn.Linear(intermediate_size, hidden_out): torch weight is [H, I];
    # stored here pre-transposed as [I, H] for x @ W.
    bound = 1.0 / (intermediate_size ** 0.5)
    dense_w = jax.random.uniform(k1, (intermediate_size, hidden_out),
                                 minval=-bound, maxval=bound, dtype=dtype)
    dense_b = jax.random.uniform(k2, (hidden_out,),
                                 minval=-bound, maxval=bound, dtype=dtype)
    ln_w = jnp.ones((hidden_out,), dtype)
    ln_b = jnp.zeros((hidden_out,), dtype)
    return {"dense_w": dense_w, "dense_b": dense_b, "ln_w": ln_w, "ln_b": ln_b}


def _reference(hidden_states, input_tensor, params, eps):
    h = jnp.einsum("bsi,ih->bsh", hidden_states, params["dense_w"]) + params["dense_b"]
    h = h + input_tensor
    mean = jnp.mean(h, axis=-1, keepdims=True)
    var = jnp.mean((h - mean) ** 2, axis=-1, keepdims=True)
    normed = (h - mean) * jax.lax.rsqrt(var + eps)
    return normed * params["ln_w"] + params["ln_b"]


if __name__ == "__main__":
    # Small but lane-dense config: intermediate_size=256, hidden_out=128.
    B, S = 2, 8
    intermediate_size = 256
    hidden_out = 128
    eps = 1e-12

    key = jax.random.PRNGKey(0)
    kx, kr, kp = jax.random.split(key, 3)

    hidden_states = jax.random.normal(kx, (B, S, intermediate_size), jnp.float32)
    input_tensor = jax.random.normal(kr, (B, S, hidden_out), jnp.float32)
    params = init_params(kp, intermediate_size, hidden_out)

    ref = _reference(hidden_states, input_tensor, params, eps)

    # Default: resident-weight single-K-step fused kernel.
    out = jax.block_until_ready(
        bert_output_forward(hidden_states, input_tensor, params, eps=eps))
    assert out.shape == (B, S, hidden_out)
    assert jnp.allclose(out, ref, atol=1e-4, rtol=1e-4), "mismatch vs reference (resident)"

    # Forced K-tiled path (exercises the reduction grid axis + f32 accumulator).
    out_kt = jax.block_until_ready(
        bert_output_forward(hidden_states, input_tensor, params, eps=eps, tile_k=128))
    assert jnp.allclose(out_kt, ref, atol=1e-4, rtol=1e-4), "mismatch vs reference (K-tiled)"

    print("KERNEL_OK")
</pallas_src>

<mosaic_0001>
module attributes {stable_mosaic.version = 11 : i64} {
  func.func @_bert_output_fused_kernel(%arg0: i32, %arg1: memref<16x256xf32, #tpu.memory_space<vmem>>, %arg2: memref<256x128xf32, #tpu.memory_space<vmem>>, %arg3: memref<16x128xf32, #tpu.memory_space<vmem>>, %arg4: memref<3x128xf32, #tpu.memory_space<vmem>>, %arg5: memref<16x128xf32, #tpu.memory_space<vmem>>) attributes {dimension_semantics = [#tpu.dimension_semantics<parallel>], iteration_bounds = array<i64: 1>, scalar_prefetch = 0 : i64, scratch_operands = 0 : i64, tpu.core_type = #tpu.core_type<tc>, window_params = [{transform_indices = @transform_0, window_bounds = array<i64: 16, 256>}, {pipeline_mode = #tpu.pipeline_mode<synchronous>, transform_indices = @transform_1, window_bounds = array<i64: 256, 128>}, {transform_indices = @transform_2, window_bounds = array<i64: 16, 128>}, {pipeline_mode = #tpu.pipeline_mode<synchronous>, transform_indices = @transform_3, window_bounds = array<i64: 3, 128>}, {transform_indices = @transform_4, window_bounds = array<i64: 16, 128>}]} {
    %c0 = arith.constant 0 : index
    %c0_0 = arith.constant 0 : index
    %0 = vector.load %arg4[%c0, %c0_0] : memref<3x128xf32, #tpu.memory_space<vmem>>, vector<1x128xf32>
    %c1 = arith.constant 1 : index
    %c0_1 = arith.constant 0 : index
    %1 = vector.load %arg4[%c1, %c0_1] : memref<3x128xf32, #tpu.memory_space<vmem>>, vector<1x128xf32>
    %c2 = arith.constant 2 : index
    %c0_2 = arith.constant 0 : index
    %2 = vector.load %arg4[%c2, %c0_2] : memref<3x128xf32, #tpu.memory_space<vmem>>, vector<1x128xf32>
    %c0_3 = arith.constant 0 : index
    %c0_4 = arith.constant 0 : index
    %3 = vector.load %arg1[%c0_3, %c0_4] : memref<16x256xf32, #tpu.memory_space<vmem>>, vector<16x256xf32>
    %c0_5 = arith.constant 0 : index
    %c0_6 = arith.constant 0 : index
    %4 = vector.load %arg2[%c0_5, %c0_6] : memref<256x128xf32, #tpu.memory_space<vmem>>, vector<256x128xf32>
    %cst = arith.constant dense<0.000000e+00> : vector<16x128xf32>
    %5 = tpu.matmul %3, %4, %cst {dimension_numbers = #tpu.dot_dimension_numbers<[1], [0], [0], [1], [0, 0, 1, 1], [], []>} : vector<16x256xf32>, vector<256x128xf32>, vector<16x128xf32> -> vector<16x128xf32>
    %c0_7 = arith.constant 0 : index
    %c0_8 = arith.constant 0 : index
    %6 = vector.load %arg3[%c0_7, %c0_8] : memref<16x128xf32, #tpu.memory_space<vmem>>, vector<16x128xf32>
    %7 = vector.broadcast %0 : vector<1x128xf32> to vector<16x128xf32>
    %8 = arith.addf %6, %7 : vector<16x128xf32>
    %9 = arith.addf %5, %8 : vector<16x128xf32>
    %cst_9 = arith.constant dense<0.000000e+00> : vector<16xf32>
    %10 = vector.multi_reduction <add>, %9, %cst_9 [1] : vector<16x128xf32> to vector<16xf32>
    %11 = vector.shape_cast %10 : vector<16xf32> to vector<16x1xf32>
    %cst_10 = arith.constant 1.280000e+02 : f32
    %12 = vector.broadcast %cst_10 : f32 to vector<16x1xf32>
    %13 = arith.divf %11, %12 : vector<16x1xf32>
    %14 = arith.mulf %9, %9 : vector<16x128xf32>
    %cst_11 = arith.constant dense<0.000000e+00> : vector<16xf32>
    %15 = vector.multi_reduction <add>, %14, %cst_11 [1] : vector<16x128xf32> to vector<16xf32>
    %16 = vector.shape_cast %15 : vector<16xf32> to vector<16x1xf32>
    %cst_12 = arith.constant 1.280000e+02 : f32
    %17 = vector.broadcast %cst_12 : f32 to vector<16x1xf32>
    %18 = arith.divf %16, %17 : vector<16x1xf32>
    %19 = arith.mulf %13, %13 : vector<16x1xf32>
    %20 = arith.subf %18, %19 : vector<16x1xf32>
    %cst_13 = arith.constant 0.000000e+00 : f32
    %21 = vector.broadcast %cst_13 : f32 to vector<16x1xf32>
    %22 = arith.maximumf %20, %21 : vector<16x1xf32>
    %cst_14 = arith.constant 9.99999996E-13 : f32
    %23 = vector.broadcast %cst_14 : f32 to vector<16x1xf32>
    %24 = arith.addf %22, %23 : vector<16x1xf32>
    %25 = math.rsqrt %24 : vector<16x1xf32>
    %26 = vector.broadcast %13 : vector<16x1xf32> to vector<16x128xf32>
    %27 = arith.subf %9, %26 : vector<16x128xf32>
    %28 = vector.broadcast %25 : vector<16x1xf32> to vector<16x128xf32>
    %29 = vector.broadcast %1 : vector<1x128xf32> to vector<16x128xf32>
    %30 = arith.mulf %28, %29 : vector<16x128xf32>
    %31 = arith.mulf %27, %30 : vector<16x128xf32>
    %32 = vector.broadcast %2 : vector<1x128xf32> to vector<16x128xf32>
    %33 = arith.addf %31, %32 : vector<16x128xf32>
    %c0_15 = arith.constant 0 : index
    %c0_16 = arith.constant 0 : index
    %34 = vector.load %arg5[%c0_15, %c0_16] : memref<16x128xf32, #tpu.memory_space<vmem>>, vector<16x128xf32>
    tpu.vector_store %arg5[%c0_15, %c0_16], %33 {strides = array<i32>} : memref<16x128xf32, #tpu.memory_space<vmem>>, vector<16x128xf32>,
    return
  }
  func.func @transform_0(%arg0: i32) -> (i32, i32) {
    %c0_i32 = arith.constant 0 : i32
    %c0_i32_0 = arith.constant 0 : i32
    return %arg0, %c0_i32 : i32, i32
  }
  func.func @transform_1(%arg0: i32) -> (i32, i32) {
    %c0_i32 = arith.constant 0 : i32
    %c0_i32_0 = arith.constant 0 : i32
    %c0_i32_1 = arith.constant 0 : i32
    return %c0_i32, %c0_i32_0 : i32, i32
  }
  func.func @transform_2(%arg0: i32) -> (i32, i32) {
    %c0_i32 = arith.constant 0 : i32
    %c0_i32_0 = arith.constant 0 : i32
    return %arg0, %c0_i32 : i32, i32
  }
  func.func @transform_3(%arg0: i32) -> (i32, i32) {
    %c0_i32 = arith.constant 0 : i32
    %c0_i32_0 = arith.constant 0 : i32
    %c0_i32_1 = arith.constant 0 : i32
    return %c0_i32, %c0_i32_0 : i32, i32
  }
  func.func @transform_4(%arg0: i32) -> (i32, i32) {
    %c0_i32 = arith.constant 0 : i32
    %c0_i32_0 = arith.constant 0 : i32
    return %arg0, %c0_i32 : i32, i32
  }
}

module attributes {stable_mosaic.version = 11 : i64} {
  func.func @_bert_output_fused_kernel(%arg0: i32, %arg1: memref<16x256xf32, #tpu.memory_space<vmem>>, %arg2: memref<256x128xf32, #tpu.memory_space<vmem>>, %arg3: memref<16x128xf32, #tpu.memory_space<vmem>>, %arg4: memref<3x128xf32, #tpu.memory_space<vmem>>, %arg5: memref<16x128xf32, #tpu.memory_space<vmem>>) attributes {dimension_semantics = [#tpu.dimension_semantics<parallel>], iteration_bounds = array<i64: 1>, scalar_prefetch = 0 : i64, scratch_operands = 0 : i64, tpu.core_type = #tpu.core_type<tc>, window_params = [{transform_indices = @transform_0, window_bounds = array<i64: 16, 256>}, {pipeline_mode = #tpu.pipeline_mode<synchronous>, transform_indices = @transform_1, window_bounds = array<i64: 256, 128>}, {transform_indices = @transform_2, window_bounds = array<i64: 16, 128>}, {pipeline_mode = #tpu.pipeline_mode<synchronous>, transform_indices = @transform_3, window_bounds = array<i64: 3, 128>}, {transform_indices = @transform_4, window_bounds = array<i64: 16, 128>}]} {
    %c0 = arith.constant 0 : index
    %c0_0 = arith.constant 0 : index
    %0 = vector.load %arg4[%c0, %c0_0] : memref<3x128xf32, #tpu.memory_space<vmem>>, vector<1x128xf32>
    %c1 = arith.constant 1 : index
    %c0_1 = arith.constant 0 : index
    %1 = vector.load %arg4[%c1, %c0_1] : memref<3x128xf32, #tpu.memory_space<vmem>>, vector<1x128xf32>
    %c2 = arith.constant 2 : index
    %c0_2 = arith.constant 0 : index
    %2 = vector.load %arg4[%c2, %c0_2] : memref<3x128xf32, #tpu.memory_space<vmem>>, vector<1x128xf32>
    %c0_3 = arith.constant 0 : index
    %c0_4 = arith.constant 0 : index
    %3 = vector.load %arg1[%c0_3, %c0_4] : memref<16x256xf32, #tpu.memory_space<vmem>>, vector<16x256xf32>
    %c0_5 = arith.constant 0 : index
    %c0_6 = arith.constant 0 : index
    %4 = vector.load %arg2[%c0_5, %c0_6] : memref<256x128xf32, #tpu.memory_space<vmem>>, vector<256x128xf32>
    %cst = arith.constant dense<0.000000e+00> : vector<16x128xf32>
    %5 = tpu.matmul %3, %4, %cst {dimension_numbers = #tpu.dot_dimension_numbers<[1], [0], [0], [1], [0, 0, 1, 1], [], []>} : vector<16x256xf32>, vector<256x128xf32>, vector<16x128xf32> -> vector<16x128xf32>
    %c0_7 = arith.constant 0 : index
    %c0_8 = arith.constant 0 : index
    %6 = vector.load %arg3[%c0_7, %c0_8] : memref<16x128xf32, #tpu.memory_space<vmem>>, vector<16x128xf32>
    %7 = vector.broadcast %0 : vector<1x128xf32> to vector<16x128xf32>
    %8 = arith.addf %6, %7 : vector<16x128xf32>
    %9 = arith.addf %5, %8 : vector<16x128xf32>
    %cst_9 = arith.constant dense<0.000000e+00> : vector<16xf32>
    %10 = vector.multi_reduction <add>, %9, %cst_9 [1] : vector<16x128xf32> to vector<16xf32>
    %11 = vector.shape_cast %10 : vector<16xf32> to vector<16x1xf32>
    %cst_10 = arith.constant 1.280000e+02 : f32
    %12 = vector.broadcast %cst_10 : f32 to vector<16x1xf32>
    %13 = arith.divf %11, %12 : vector<16x1xf32>
    %14 = arith.mulf %9, %9 : vector<16x128xf32>
    %cst_11 = arith.constant dense<0.000000e+00> : vector<16xf32>
    %15 = vector.multi_reduction <add>, %14, %cst_11 [1] : vector<16x128xf32> to vector<16xf32>
    %16 = vector.shape_cast %15 : vector<16xf32> to vector<16x1xf32>
    %cst_12 = arith.constant 1.280000e+02 : f32
    %17 = vector.broadcast %cst_12 : f32 to vector<16x1xf32>
    %18 = arith.divf %16, %17 : vector<16x1xf32>
    %19 = arith.mulf %13, %13 : vector<16x1xf32>
    %20 = arith.subf %18, %19 : vector<16x1xf32>
    %cst_13 = arith.constant 0.000000e+00 : f32
    %21 = vector.broadcast %cst_13 : f32 to vector<16x1xf32>
    %22 = arith.maximumf %20, %21 : vector<16x1xf32>
    %cst_14 = arith.constant 9.99999996E-13 : f32
    %23 = vector.broadcast %cst_14 : f32 to vector<16x1xf32>
    %24 = arith.addf %22, %23 : vector<16x1xf32>
    %25 = math.rsqrt %24 : vector<16x1xf32>
    %26 = vector.broadcast %13 : vector<16x1xf32> to vector<16x128xf32>
    %27 = arith.subf %9, %26 : vector<16x128xf32>
    %28 = vector.broadcast %25 : vector<16x1xf32> to vector<16x128xf32>
    %29 = vector.broadcast %1 : vector<1x128xf32> to vector<16x128xf32>
    %30 = arith.mulf %28, %29 : vector<16x128xf32>
    %31 = arith.mulf %27, %30 : vector<16x128xf32>
    %32 = vector.broadcast %2 : vector<1x128xf32> to vector<16x128xf32>
    %33 = arith.addf %31, %32 : vector<16x128xf32>
    %c0_15 = arith.constant 0 : index
    %c0_16 = arith.constant 0 : index
    %34 = vector.load %arg5[%c0_15, %c0_16] : memref<16x128xf32, #tpu.memory_space<vmem>>, vector<16x128xf32>
    tpu.vector_store %arg5[%c0_15, %c0_16], %33 {strides = array<i32>} : memref<16x128xf32, #tpu.memory_space<vmem>>, vector<16x128xf32>,
    return
  }
  func.func @transform_0(%arg0: i32) -> (i32, i32) {
    %c0_i32 = arith.constant 0 : i32
    %c0_i32_0 = arith.constant 0 : i32
    return %arg0, %c0_i32 : i32, i32
  }
  func.func @transform_1(%arg0: i32) -> (i32, i32) {
    %c0_i32 = arith.constant 0 : i32
    %c0_i32_0 = arith.constant 0 : i32
    %c0_i32_1 = arith.constant 0 : i32
    return %c0_i32, %c0_i32_0 : i32, i32
  }
  func.func @transform_2(%arg0: i32) -> (i32, i32) {
    %c0_i32 = arith.constant 0 : i32
    %c0_i32_0 = arith.constant 0 : i32
    return %arg0, %c0_i32 : i32, i32
  }
  func.func @transform_3(%arg0: i32) -> (i32, i32) {
    %c0_i32 = arith.constant 0 : i32
    %c0_i32_0 = arith.constant 0 : i32
    %c0_i32_1 = arith.constant 0 : i32
    return %c0_i32, %c0_i32_0 : i32, i32
  }
  func.func @transform_4(%arg0: i32) -> (i32, i32) {
    %c0_i32 = arith.constant 0 : i32
    %c0_i32_0 = arith.constant 0 : i32
    return %arg0, %c0_i32 : i32, i32
  }
}

</mosaic_0001>

<llo_original>
// kernel: tpu_custom_call.1
$region0: #{tpu_custom_call.1}
  #allocation0 [shape = 'u32[]', space=smem, size = 0x4, offset = 0x4, fixed_abs, tag = 'smem constant byte address 0x4 - core index']
  #allocation1 [shape = 'u32[144,128]{1,0:T(1,128)}', space=vmem, size = 0x12000, scoped, tag = 'internal scratch']
  %s0 = inlined_call_operand.hbm [shape: f32[16,256], index: 0, kind: input, shape index: {}]
  %s1 = inlined_call_operand.hbm [shape: f32[256,128], index: 1, kind: input, shape index: {}]
  %s2 = inlined_call_operand.hbm [shape: f32[16,128], index: 2, kind: input, shape index: {}]
  %s3 = inlined_call_operand.vmem [shape: f32[3,128], index: 3, kind: input, shape index: {}]
  %s4 = inlined_call_operand.hbm [shape: f32[16,128], index: 4, kind: output, shape index: {}]
  %s5 = sld [smem:[#allocation0]]
  $region38: #{tpu_custom_call.1} parent=0
    _
  %s7 = ssub.s32 1, %s5
  %s8 = scalar_select 0, %s7, %s5
  $region1: #{tpu_custom_call.1} parent=0
    #allocation2 [shape = 'u8[16384]{0}', space=vmem, size = 0x4000, scoped, tag = 'input window, operand 0, single buffered']
    #allocation3 [shape = 's32[1]{0}', space=sflag, size = 0x4, scoped, tag = 'scoped memory for tpu_custom_call.1']
    #allocation4 [shape = 's32[1]{0}', space=sflag, size = 0x4, scoped, tag = 'scoped memory for tpu_custom_call.1']
    #allocation5 [shape = 'u8[131072]{0}', space=vmem, size = 0x20000, scoped, tag = 'input window, operand 1, single buffered']
    #allocation6 [shape = 's32[1]{0}', space=sflag, size = 0x4, scoped, tag = 'scoped memory for tpu_custom_call.1']
    #allocation7 [shape = 'u8[8192]{0}', space=vmem, size = 0x2000, scoped, tag = 'input window, operand 2, single buffered']
    #allocation8 [shape = 'u8[8192]{0}', space=vmem, size = 0x2000, scoped, tag = 'output window, operand 0, single buffered']
    %9 = vsyncpa [#allocation3], 0
    %10 = vsyncpa [#allocation6], 0
    %11 = vsyncpa [#allocation4], 0
    // Predicated region
    $region2: #{tpu_custom_call.1} parent=1 // pred_check
      _
    $region3: #{tpu_custom_call.1} parent=1 // pred_check_branch
      %13 = sbr.rel (0) target = $region5
    $region4: #{tpu_custom_call.1} parent=1 // pred_region
      %s15 = ssub.s32 512, 512
      %16 = vsyncadd [#allocation3], %s15
      %s17 = sshll.u32 [#allocation2], 4
      %s18 = int_to_ptr.vmem [resolvable:$true] %s17
      %23 = dma.hbm_to_vmem [thread:$0]  %s0, 512, %s18, [#allocation3], 256, 256, 16
    $region5: #{tpu_custom_call.1} parent=1 // pred_fallthru
      _
    // Predicated region
    $region6: #{tpu_custom_call.1} parent=1 // pred_check
      _
    $region7: #{tpu_custom_call.1} parent=1 // pred_check_branch
      %25 = sbr.rel (0) target = $region9
    $region8: #{tpu_custom_call.1} parent=1 // pred_region
      %s27 = ssub.s32 4096, 4096
      %28 = vsyncadd [#allocation6], %s27
      %s29 = sshll.u32 [#allocation5], 4
      %s30 = int_to_ptr.vmem [resolvable:$true] %s29
      %35 = dma.hbm_to_vmem [thread:$0]  %s1, 4096, %s30, [#allocation6], 128, 128, 8
    $region9: #{tpu_custom_call.1} parent=1 // pred_fallthru
      _
    // Predicated region
    $region10: #{tpu_custom_call.1} parent=1 // pred_check
      _
    $region11: #{tpu_custom_call.1} parent=1 // pred_check_branch
      %37 = sbr.rel (0) target = $region13
    $region12: #{tpu_custom_call.1} parent=1 // pred_region
      %s39 = ssub.s32 256, 256
      %40 = vsyncadd [#allocation6], %s39
      %s41 = sshll.u32 [#allocation7], 4
      %s42 = int_to_ptr.vmem [resolvable:$true] %s41
      %47 = dma.hbm_to_vmem [thread:$0]  %s2, 256, %s42, [#allocation6], 128, 128, 8
    $region13: #{tpu_custom_call.1} parent=1 // pred_fallthru
      _
    // Predicated region
    $region14: #{tpu_custom_call.1} parent=1 // pred_check
      _
    $region15: #{tpu_custom_call.1} parent=1 // pred_check_branch
      %49 = sbr.rel (0) target = $region17
    $region16: #{tpu_custom_call.1} parent=1 // pred_region
      _
    $region17: #{tpu_custom_call.1} parent=1 // pred_fallthru
      _
    // Predicated region
    $region18: #{tpu_custom_call.1} parent=1 // pred_check
      _
    $region19: #{tpu_custom_call.1} parent=1 // pred_check_branch
      %51 = sbr.rel (0) target = $region21
    $region20: #{tpu_custom_call.1} parent=1 // pred_region
      %52 = dma.done [#allocation3], 512
    $region21: #{tpu_custom_call.1} parent=1 // pred_fallthru
      _
    // Predicated region
    $region22: #{tpu_custom_call.1} parent=1 // pred_check
      _
    $region23: #{tpu_custom_call.1} parent=1 // pred_check_branch
      %54 = sbr.rel (0) target = $region25
    $region24: #{tpu_custom_call.1} parent=1 // pred_region
      %55 = dma.done [#allocation6], 4096
    $region25: #{tpu_custom_call.1} parent=1 // pred_fallthru
      _
    // Predicated region
    $region26: #{tpu_custom_call.1} parent=1 // pred_check
      _
    $region27: #{tpu_custom_call.1} parent=1 // pred_check_branch
      %57 = sbr.rel (0) target = $region29
    $region28: #{tpu_custom_call.1} parent=1 // pred_region
      %58 = dma.done [#allocation6], 256
    $region29: #{tpu_custom_call.1} parent=1 // pred_fallthru
      _
    %v59 = vld [vmem:[%s3] sm:$0x1]
    %v60 = vld [vmem:[%s3 + $0x1] sm:$0x1]
    %v61 = vld [vmem:[%s3 + $0x2] sm:$0x1]
    %v62 = vld [vmem:[#allocation2] sm:$0xff]
    %v63 = vld [vmem:[#allocation2 + $0x8] sm:$0xff]
    %v64 = vld [vmem:[#allocation2 + $0x10] sm:$0xff]
    %v65 = vld [vmem:[#allocation2 + $0x18] sm:$0xff]
    %v66 = vld [vmem:[#allocation5] sm:$0xff]
    %v67 = vld [vmem:[#allocation5 + $0x8] sm:$0xff]
    %v68 = vld [vmem:[#allocation5 + $0x10] sm:$0xff]
    %v69 = vld [vmem:[#allocation5 + $0x18] sm:$0xff]
    %v70 = vld [vmem:[#allocation5 + $0x20] sm:$0xff]
    %v71 = vld [vmem:[#allocation5 + $0x28] sm:$0xff]
    %v72 = vld [vmem:[#allocation5 + $0x30] sm:$0xff]
    %v73 = vld [vmem:[#allocation5 + $0x38] sm:$0xff]
    %v74 = vld [vmem:[#allocation5 + $0x40] sm:$0xff]
    %v75 = vld [vmem:[#allocation5 + $0x48] sm:$0xff]
    %v76 = vld [vmem:[#allocation5 + $0x50] sm:$0xff]
    %v77 = vld [vmem:[#allocation5 + $0x58] sm:$0xff]
    %v78 = vld [vmem:[#allocation5 + $0x60] sm:$0xff]
    %v79 = vld [vmem:[#allocation5 + $0x68] sm:$0xff]
    %v80 = vld [vmem:[#allocation5 + $0x70] sm:$0xff]
    %v81 = vld [vmem:[#allocation5 + $0x78] sm:$0xff]
    %v82 = vld [vmem:[#allocation5 + $0x80] sm:$0xff]
    %v83 = vld [vmem:[#allocation5 + $0x88] sm:$0xff]
    %v84 = vld [vmem:[#allocation5 + $0x90] sm:$0xff]
    %v85 = vld [vmem:[#allocation5 + $0x98] sm:$0xff]
    %v86 = vld [vmem:[#allocation5 + $0xa0] sm:$0xff]
    %v87 = vld [vmem:[#allocation5 + $0xa8] sm:$0xff]
    %v88 = vld [vmem:[#allocation5 + $0xb0] sm:$0xff]
    %v89 = vld [vmem:[#allocation5 + $0xb8] sm:$0xff]
    %v90 = vld [vmem:[#allocation5 + $0xc0] sm:$0xff]
    %v91 = vld [vmem:[#allocation5 + $0xc8] sm:$0xff]
    %v92 = vld [vmem:[#allocation5 + $0xd0] sm:$0xff]
    %v93 = vld [vmem:[#allocation5 + $0xd8] sm:$0xff]
    %v94 = vld [vmem:[#allocation5 + $0xe0] sm:$0xff]
    %v95 = vld [vmem:[#allocation5 + $0xe8] sm:$0xff]
    %v96 = vld [vmem:[#allocation5 + $0xf0] sm:$0xff]
    %v97 = vld [vmem:[#allocation5 + $0xf8] sm:$0xff]
    %v98 = vld [vmem:[#allocation7] sm:$0xff]
    %v99 = vld [vmem:[#allocation7 + $0x8] sm:$0xff]
    %v100 = vlaneseq
    %v101 = vshrl.u32 %v100, 7
    %v102 = vsub.s32 0, %v101
    %v103 = vrot.slane %v59, %v102
    %v104 = vadd.f32 %v98, %v103
    %v105 = vadd.f32 %v99, %v103
    %106 = vmatprep.subr.mxu0 0.0
    %107 = vmatpush1.msra.mxu0 %v66
    %108 = vmatprep.subr.mxu0 0.0
    %109 = vmatpush1.msra.mxu0 %v67
    %110 = vmatprep.subr.mxu0 0.0
    %111 = vmatpush1.msra.mxu0 %v68
    %112 = vmatprep.subr.mxu0 0.0
    %113 = vmatpush1.msra.mxu0 %v69
    %114 = vmatprep.subr.mxu0 0.0
    %115 = vmatpush1.msra.mxu0 %v70
    %116 = vmatprep.subr.mxu0 0.0
    %117 = vmatpush1.msra.mxu0 %v71
    %118 = vmatprep.subr.mxu0 0.0
    %119 = vmatpush1.msra.mxu0 %v72
    %120 = vmatprep.subr.mxu0 0.0
    %121 = vmatpush1.msra.mxu0 %v73
    %122 = vmatprep.subr.mxu0 0.0
    %123 = vmatpush1.msra.mxu0 %v74
    %124 = vmatprep.subr.mxu0 0.0
    %125 = vmatpush1.msra.mxu0 %v75
    %126 = vmatprep.subr.mxu0 0.0
    %127 = vmatpush1.msra.mxu0 %v76
    %128 = vmatprep.subr.mxu0 0.0
    %129 = vmatpush1.msra.mxu0 %v77
    %130 = vmatprep.subr.mxu0 0.0
    %131 = vmatpush1.msra.mxu0 %v78
    %132 = vmatprep.subr.mxu0 0.0
    %133 = vmatpush1.msra.mxu0 %v79
    %134 = vmatprep.subr.mxu0 0.0
    %135 = vmatpush1.msra.mxu0 %v80
    %136 = vmatprep.subr.mxu0 0.0
    %137 = vmatpush1.msra.mxu0 %v81
    %138 = vmatprep.subr.mxu0 0.0
    %139 = vmatpush1.msra.mxu0 %v82
    %140 = vmatprep.subr.mxu0 0.0
    %141 = vmatpush1.msra.mxu0 %v83
    %142 = vmatprep.subr.mxu0 0.0
    %143 = vmatpush1.msra.mxu0 %v84
    %144 = vmatprep.subr.mxu0 0.0
    %145 = vmatpush1.msra.mxu0 %v85
    %146 = vmatprep.subr.mxu0 0.0
    %147 = vmatpush1.msra.mxu0 %v86
    %148 = vmatprep.subr.mxu0 0.0
    %149 = vmatpush1.msra.mxu0 %v87
    %150 = vmatprep.subr.mxu0 0.0
    %151 = vmatpush1.msra.mxu0 %v88
    %152 = vmatprep.subr.mxu0 0.0
    %153 = vmatpush1.msra.mxu0 %v89
    %154 = vmatprep.subr.mxu0 0.0
    %155 = vmatpush1.msra.mxu0 %v90
    %156 = vmatprep.subr.mxu0 0.0
    %157 = vmatpush1.msra.mxu0 %v91
    %158 = vmatprep.subr.mxu0 0.0
    %159 = vmatpush1.msra.mxu0 %v92
    %160 = vmatprep.subr.mxu0 0.0
    %161 = vmatpush1.msra.mxu0 %v93
    %162 = vmatprep.subr.mxu0 0.0
    %163 = vmatpush1.msra.mxu0 %v94
    %164 = vmatprep.subr.mxu0 0.0
    %165 = vmatpush1.msra.mxu0 %v95
    %166 = vmatprep.subr.mxu0 0.0
    %167 = vmatpush1.msra.mxu0 %v96
    %168 = vmatprep.subr.mxu0 0.0
    %169 = vmatpush1.msra.mxu0 %v97
    %170 = vmatprep.mubr.f32.mxu0 %v63
    %171 = vmatmul.mubr.f32.gmra.mrb[0].mxu0 %v62
    %v172 = vpop.f32.mrb[0].mxu0
    %v173 = vadd.f32 %v104, %v172
    %v174 = vpop.f32.mrb[0].mxu0
    %175 = vmatprep.mubr.f32.mxu0 %v65
    %176 = vmatmul.mubr.f32.gmra.mrb[0].mxu0 %v64
    %v177 = vpop.f32.mrb[0].mxu0
    %v178 = vadd.f32 %v105, %v177
    %v179 = vpop.f32.mrb[0].mxu0
    %180 = vdwg.mxu0
    %181 = vadd.xlane.f32.xlu0 %v173
    %v182 = vpop.xlane.xlu0 %181
    %183 = vadd.xlane.f32.xlu0 %v178
    %v184 = vpop.xlane.xlu0 %183
    %v185 = vrcp.pop 128.0
    %v186 = vmul.f32 %v182, %v185
    %v187 = vmul.f32 %v184, %v185
    %v188 = vmul.f32 %v173, %v173
    %v189 = vmul.f32 %v178, %v178
    %190 = vadd.xlane.f32.xlu0 %v188
    %v191 = vpop.xlane.xlu0 %190
    %192 = vadd.xlane.f32.xlu0 %v189
    %v193 = vpop.xlane.xlu0 %192
    %v194 = vmul.f32 %v191, %v185
    %v195 = vmul.f32 %v193, %v185
    %v196 = vmul.f32 %v186, %v186
    %v197 = vmul.f32 %v187, %v187
    %v198 = vsub.f32 %v194, %v196
    %v199 = vsub.f32 %v195, %v197
    %v200 = vmax.f32 %v198, 0.0
    %v201 = vmax.f32 %v199, 0.0
    %v202 = vadd.f32 %v200, 1e-12
    %v203 = vadd.f32 %v201, 1e-12
    %v204 = vrsqrt.pop %v202
    %v205 = vrsqrt.pop %v203
    %v206 = vsub.f32 %v173, %v186
    %v207 = vsub.f32 %v178, %v187
    %v208 = vlaneseq
    %v209 = vshrl.u32 %v208, 7
    %v210 = vsub.s32 0, %v209
    %v211 = vrot.slane %v60, %v210
    %v212 = vmul.f32 %v204, %v211
    %v213 = vmul.f32 %v205, %v211
    %v214 = vmul.f32 %v206, %v212
    %v215 = vmul.f32 %v207, %v213
    %v216 = vlaneseq
    %v217 = vshrl.u32 %v216, 7
    %v218 = vsub.s32 0, %v217
    %v219 = vrot.slane %v61, %v218
    %v220 = vadd.f32 %v214, %v219
    %v221 = vadd.f32 %v215, %v219
    %222 = vst [vmem:[#allocation8] sm:$0xff] %v220
    %223 = vst [vmem:[#allocation8 + $0x8] sm:$0xff] %v221
    // Predicated region
    $region30: #{tpu_custom_call.1} parent=1 // pred_check
      _
    $region31: #{tpu_custom_call.1} parent=1 // pred_check_branch
      %225 = sbr.rel (0) target = $region33
    $region32: #{tpu_custom_call.1} parent=1 // pred_region
      %s227 = ssub.s32 256, 256
      %228 = vsyncadd [#allocation4], %s227
      %s229 = sshll.u32 [#allocation8], 4
      %s230 = int_to_ptr.vmem [resolvable:$true] %s229
      %235 = dma.vmem_to_hbm [thread:$0]  %s230, 256, %s4, [#allocation4], 128, 128, 8
    $region33: #{tpu_custom_call.1} parent=1 // pred_fallthru
      _
    // Predicated region
    $region34: #{tpu_custom_call.1} parent=1 // pred_check
      _
    $region35: #{tpu_custom_call.1} parent=1 // pred_check_branch
      %237 = sbr.rel (0) target = $region37
    $region36: #{tpu_custom_call.1} parent=1 // pred_region
      %238 = dma.done [#allocation4], 256
    $region37: #{tpu_custom_call.1} parent=1 // pred_fallthru
      _
    %239 = vsyncpa [#allocation3], 1
    %240 = vsyncpa [#allocation6], 1
    %241 = vsyncpa [#allocation4], 1

// kernel: tpu_custom_call.1
$region0: #{tpu_custom_call.1}
  #allocation0 [shape = 'u32[]', space=smem, size = 0x4, offset = 0x4, fixed_abs, tag = 'smem constant byte address 0x4 - core index']
  #allocation1 [shape = 'u32[144,128]{1,0:T(1,128)}', space=vmem, size = 0x12000, scoped, tag = 'internal scratch']
  %s0 = inlined_call_operand.hbm [shape: f32[16,256], index: 0, kind: input, shape index: {}]
  %s1 = inlined_call_operand.hbm [shape: f32[256,128], index: 1, kind: input, shape index: {}]
  %s2 = inlined_call_operand.hbm [shape: f32[16,128], index: 2, kind: input, shape index: {}]
  %s3 = inlined_call_operand.vmem [shape: f32[3,128], index: 3, kind: input, shape index: {}]
  %s4 = inlined_call_operand.hbm [shape: f32[16,128], index: 4, kind: output, shape index: {}]
  %s5 = sld [smem:[#allocation0]]
  $region38: #{tpu_custom_call.1} parent=0
    _
  %s7 = ssub.s32 1, %s5
  %s8 = scalar_select 0, %s7, %s5
  $region1: #{tpu_custom_call.1} parent=0
    #allocation2 [shape = 'u8[16384]{0}', space=vmem, size = 0x4000, scoped, tag = 'input window, operand 0, single buffered']
    #allocation3 [shape = 's32[1]{0}', space=sflag, size = 0x4, scoped, tag = 'scoped memory for tpu_custom_call.1']
    #allocation4 [shape = 's32[1]{0}', space=sflag, size = 0x4, scoped, tag = 'scoped memory for tpu_custom_call.1']
    #allocation5 [shape = 'u8[131072]{0}', space=vmem, size = 0x20000, scoped, tag = 'input window, operand 1, single buffered']
    #allocation6 [shape = 's32[1]{0}', space=sflag, size = 0x4, scoped, tag = 'scoped memory for tpu_custom_call.1']
    #allocation7 [shape = 'u8[8192]{0}', space=vmem, size = 0x2000, scoped, tag = 'input window, operand 2, single buffered']
    #allocation8 [shape = 'u8[8192]{0}', space=vmem, size = 0x2000, scoped, tag = 'output window, operand 0, single buffered']
    %9 = vsyncpa [#allocation3], 0
    %10 = vsyncpa [#allocation6], 0
    %11 = vsyncpa [#allocation4], 0
    // Predicated region
    $region2: #{tpu_custom_call.1} parent=1 // pred_check
      _
    $region3: #{tpu_custom_call.1} parent=1 // pred_check_branch
      %13 = sbr.rel (0) target = $region5
    $region4: #{tpu_custom_call.1} parent=1 // pred_region
      %s15 = ssub.s32 512, 512
      %16 = vsyncadd [#allocation3], %s15
      %s17 = sshll.u32 [#allocation2], 4
      %s18 = int_to_ptr.vmem [resolvable:$true] %s17
      %23 = dma.hbm_to_vmem [thread:$0]  %s0, 512, %s18, [#allocation3], 256, 256, 16
    $region5: #{tpu_custom_call.1} parent=1 // pred_fallthru
      _
    // Predicated region
    $region6: #{tpu_custom_call.1} parent=1 // pred_check
      _
    $region7: #{tpu_custom_call.1} parent=1 // pred_check_branch
      %25 = sbr.rel (0) target = $region9
    $region8: #{tpu_custom_call.1} parent=1 // pred_region
      %s27 = ssub.s32 4096, 4096
      %28 = vsyncadd [#allocation6], %s27
      %s29 = sshll.u32 [#allocation5], 4
      %s30 = int_to_ptr.vmem [resolvable:$true] %s29
      %35 = dma.hbm_to_vmem [thread:$0]  %s1, 4096, %s30, [#allocation6], 128, 128, 8
    $region9: #{tpu_custom_call.1} parent=1 // pred_fallthru
      _
    // Predicated region
    $region10: #{tpu_custom_call.1} parent=1 // pred_check
      _
    $region11: #{tpu_custom_call.1} parent=1 // pred_check_branch
      %37 = sbr.rel (0) target = $region13
    $region12: #{tpu_custom_call.1} parent=1 // pred_region
      %s39 = ssub.s32 256, 256
      %40 = vsyncadd [#allocation6], %s39
      %s41 = sshll.u32 [#allocation7], 4
      %s42 = int_to_ptr.vmem [resolvable:$true] %s41
      %47 = dma.hbm_to_vmem [thread:$0]  %s2, 256, %s42, [#allocation6], 128, 128, 8
    $region13: #{tpu_custom_call.1} parent=1 // pred_fallthru
      _
    // Predicated region
    $region14: #{tpu_custom_call.1} parent=1 // pred_check
      _
    $region15: #{tpu_custom_call.1} parent=1 // pred_check_branch
      %49 = sbr.rel (0) target = $region17
    $region16: #{tpu_custom_call.1} parent=1 // pred_region
      _
    $region17: #{tpu_custom_call.1} parent=1 // pred_fallthru
      _
    // Predicated region
    $region18: #{tpu_custom_call.1} parent=1 // pred_check
      _
    $region19: #{tpu_custom_call.1} parent=1 // pred_check_branch
      %51 = sbr.rel (0) target = $region21
    $region20: #{tpu_custom_call.1} parent=1 // pred_region
      %52 = dma.done [#allocation3], 512
    $region21: #{tpu_custom_call.1} parent=1 // pred_fallthru
      _
    // Predicated region
    $region22: #{tpu_custom_call.1} parent=1 // pred_check
      _
    $region23: #{tpu_custom_call.1} parent=1 // pred_check_branch
      %54 = sbr.rel (0) target = $region25
    $region24: #{tpu_custom_call.1} parent=1 // pred_region
      %55 = dma.done [#allocation6], 4096
    $region25: #{tpu_custom_call.1} parent=1 // pred_fallthru
      _
    // Predicated region
    $region26: #{tpu_custom_call.1} parent=1 // pred_check
      _
    $region27: #{tpu_custom_call.1} parent=1 // pred_check_branch
      %57 = sbr.rel (0) target = $region29
    $region28: #{tpu_custom_call.1} parent=1 // pred_region
      %58 = dma.done [#allocation6], 256
    $region29: #{tpu_custom_call.1} parent=1 // pred_fallthru
      _
    %v59 = vld [vmem:[%s3] sm:$0x1]
    %v60 = vld [vmem:[%s3 + $0x1] sm:$0x1]
    %v61 = vld [vmem:[%s3 + $0x2] sm:$0x1]
    %v62 = vld [vmem:[#allocation2] sm:$0xff]
    %v63 = vld [vmem:[#allocation2 + $0x8] sm:$0xff]
    %v64 = vld [vmem:[#allocation2 + $0x10] sm:$0xff]
    %v65 = vld [vmem:[#allocation2 + $0x18] sm:$0xff]
    %v66 = vld [vmem:[#allocation5] sm:$0xff]
    %v67 = vld [vmem:[#allocation5 + $0x8] sm:$0xff]
    %v68 = vld [vmem:[#allocation5 + $0x10] sm:$0xff]
    %v69 = vld [vmem:[#allocation5 + $0x18] sm:$0xff]
    %v70 = vld [vmem:[#allocation5 + $0x20] sm:$0xff]
    %v71 = vld [vmem:[#allocation5 + $0x28] sm:$0xff]
    %v72 = vld [vmem:[#allocation5 + $0x30] sm:$0xff]
    %v73 = vld [vmem:[#allocation5 + $0x38] sm:$0xff]
    %v74 = vld [vmem:[#allocation5 + $0x40] sm:$0xff]
    %v75 = vld [vmem:[#allocation5 + $0x48] sm:$0xff]
    %v76 = vld [vmem:[#allocation5 + $0x50] sm:$0xff]
    %v77 = vld [vmem:[#allocation5 + $0x58] sm:$0xff]
    %v78 = vld [vmem:[#allocation5 + $0x60] sm:$0xff]
    %v79 = vld [vmem:[#allocation5 + $0x68] sm:$0xff]
    %v80 = vld [vmem:[#allocation5 + $0x70] sm:$0xff]
    %v81 = vld [vmem:[#allocation5 + $0x78] sm:$0xff]
    %v82 = vld [vmem:[#allocation5 + $0x80] sm:$0xff]
    %v83 = vld [vmem:[#allocation5 + $0x88] sm:$0xff]
    %v84 = vld [vmem:[#allocation5 + $0x90] sm:$0xff]
    %v85 = vld [vmem:[#allocation5 + $0x98] sm:$0xff]
    %v86 = vld [vmem:[#allocation5 + $0xa0] sm:$0xff]
    %v87 = vld [vmem:[#allocation5 + $0xa8] sm:$0xff]
    %v88 = vld [vmem:[#allocation5 + $0xb0] sm:$0xff]
    %v89 = vld [vmem:[#allocation5 + $0xb8] sm:$0xff]
    %v90 = vld [vmem:[#allocation5 + $0xc0] sm:$0xff]
    %v91 = vld [vmem:[#allocation5 + $0xc8] sm:$0xff]
    %v92 = vld [vmem:[#allocation5 + $0xd0] sm:$0xff]
    %v93 = vld [vmem:[#allocation5 + $0xd8] sm:$0xff]
    %v94 = vld [vmem:[#allocation5 + $0xe0] sm:$0xff]
    %v95 = vld [vmem:[#allocation5 + $0xe8] sm:$0xff]
    %v96 = vld [vmem:[#allocation5 + $0xf0] sm:$0xff]
    %v97 = vld [vmem:[#allocation5 + $0xf8] sm:$0xff]
    %v98 = vld [vmem:[#allocation7] sm:$0xff]
    %v99 = vld [vmem:[#allocation7 + $0x8] sm:$0xff]
    %v100 = vlaneseq
    %v101 = vshrl.u32 %v100, 7
    %v102 = vsub.s32 0, %v101
    %v103 = vrot.slane %v59, %v102
    %v104 = vadd.f32 %v98, %v103
    %v105 = vadd.f32 %v99, %v103
    %106 = vmatprep.subr.mxu0 0.0
    %107 = vmatpush1.msra.mxu0 %v66
    %108 = vmatprep.subr.mxu0 0.0
    %109 = vmatpush1.msra.mxu0 %v67
    %110 = vmatprep.subr.mxu0 0.0
    %111 = vmatpush1.msra.mxu0 %v68
    %112 = vmatprep.subr.mxu0 0.0
    %113 = vmatpush1.msra.mxu0 %v69
    %114 = vmatprep.subr.mxu0 0.0
    %115 = vmatpush1.msra.mxu0 %v70
    %116 = vmatprep.subr.mxu0 0.0
    %117 = vmatpush1.msra.mxu0 %v71
    %118 = vmatprep.subr.mxu0 0.0
    %119 = vmatpush1.msra.mxu0 %v72
    %120 = vmatprep.subr.mxu0 0.0
    %121 = vmatpush1.msra.mxu0 %v73
    %122 = vmatprep.subr.mxu0 0.0
    %123 = vmatpush1.msra.mxu0 %v74
    %124 = vmatprep.subr.mxu0 0.0
    %125 = vmatpush1.msra.mxu0 %v75
    %126 = vmatprep.subr.mxu0 0.0
    %127 = vmatpush1.msra.mxu0 %v76
    %128 = vmatprep.subr.mxu0 0.0
    %129 = vmatpush1.msra.mxu0 %v77
    %130 = vmatprep.subr.mxu0 0.0
    %131 = vmatpush1.msra.mxu0 %v78
    %132 = vmatprep.subr.mxu0 0.0
    %133 = vmatpush1.msra.mxu0 %v79
    %134 = vmatprep.subr.mxu0 0.0
    %135 = vmatpush1.msra.mxu0 %v80
    %136 = vmatprep.subr.mxu0 0.0
    %137 = vmatpush1.msra.mxu0 %v81
    %138 = vmatprep.subr.mxu0 0.0
    %139 = vmatpush1.msra.mxu0 %v82
    %140 = vmatprep.subr.mxu0 0.0
    %141 = vmatpush1.msra.mxu0 %v83
    %142 = vmatprep.subr.mxu0 0.0
    %143 = vmatpush1.msra.mxu0 %v84
    %144 = vmatprep.subr.mxu0 0.0
    %145 = vmatpush1.msra.mxu0 %v85
    %146 = vmatprep.subr.mxu0 0.0
    %147 = vmatpush1.msra.mxu0 %v86
    %148 = vmatprep.subr.mxu0 0.0
    %149 = vmatpush1.msra.mxu0 %v87
    %150 = vmatprep.subr.mxu0 0.0
    %151 = vmatpush1.msra.mxu0 %v88
    %152 = vmatprep.subr.mxu0 0.0
    %153 = vmatpush1.msra.mxu0 %v89
    %154 = vmatprep.subr.mxu0 0.0
    %155 = vmatpush1.msra.mxu0 %v90
    %156 = vmatprep.subr.mxu0 0.0
    %157 = vmatpush1.msra.mxu0 %v91
    %158 = vmatprep.subr.mxu0 0.0
    %159 = vmatpush1.msra.mxu0 %v92
    %160 = vmatprep.subr.mxu0 0.0
    %161 = vmatpush1.msra.mxu0 %v93
    %162 = vmatprep.subr.mxu0 0.0
    %163 = vmatpush1.msra.mxu0 %v94
    %164 = vmatprep.subr.mxu0 0.0
    %165 = vmatpush1.msra.mxu0 %v95
    %166 = vmatprep.subr.mxu0 0.0
    %167 = vmatpush1.msra.mxu0 %v96
    %168 = vmatprep.subr.mxu0 0.0
    %169 = vmatpush1.msra.mxu0 %v97
    %170 = vmatprep.mubr.f32.mxu0 %v63
    %171 = vmatmul.mubr.f32.gmra.mrb[0].mxu0 %v62
    %v172 = vpop.f32.mrb[0].mxu0
    %v173 = vadd.f32 %v104, %v172
    %v174 = vpop.f32.mrb[0].mxu0
    %175 = vmatprep.mubr.f32.mxu0 %v65
    %176 = vmatmul.mubr.f32.gmra.mrb[0].mxu0 %v64
    %v177 = vpop.f32.mrb[0].mxu0
    %v178 = vadd.f32 %v105, %v177
    %v179 = vpop.f32.mrb[0].mxu0
    %180 = vdwg.mxu0
    %181 = vadd.xlane.f32.xlu0 %v173
    %v182 = vpop.xlane.xlu0 %181
    %183 = vadd.xlane.f32.xlu0 %v178
    %v184 = vpop.xlane.xlu0 %183
    %v185 = vrcp.pop 128.0
    %v186 = vmul.f32 %v182, %v185
    %v187 = vmul.f32 %v184, %v185
    %v188 = vmul.f32 %v173, %v173
    %v189 = vmul.f32 %v178, %v178
    %190 = vadd.xlane.f32.xlu0 %v188
    %v191 = vpop.xlane.xlu0 %190
    %192 = vadd.xlane.f32.xlu0 %v189
    %v193 = vpop.xlane.xlu0 %192
    %v194 = vmul.f32 %v191, %v185
    %v195 = vmul.f32 %v193, %v185
    %v196 = vmul.f32 %v186, %v186
    %v197 = vmul.f32 %v187, %v187
    %v198 = vsub.f32 %v194, %v196
    %v199 = vsub.f32 %v195, %v197
    %v200 = vmax.f32 %v198, 0.0
    %v201 = vmax.f32 %v199, 0.0
    %v202 = vadd.f32 %v200, 1e-12
    %v203 = vadd.f32 %v201, 1e-12
    %v204 = vrsqrt.pop %v202
    %v205 = vrsqrt.pop %v203
    %v206 = vsub.f32 %v173, %v186
    %v207 = vsub.f32 %v178, %v187
    %v208 = vlaneseq
    %v209 = vshrl.u32 %v208, 7
    %v210 = vsub.s32 0, %v209
    %v211 = vrot.slane %v60, %v210
    %v212 = vmul.f32 %v204, %v211
    %v213 = vmul.f32 %v205, %v211
    %v214 = vmul.f32 %v206, %v212
    %v215 = vmul.f32 %v207, %v213
    %v216 = vlaneseq
    %v217 = vshrl.u32 %v216, 7
    %v218 = vsub.s32 0, %v217
    %v219 = vrot.slane %v61, %v218
    %v220 = vadd.f32 %v214, %v219
    %v221 = vadd.f32 %v215, %v219
    %222 = vst [vmem:[#allocation8] sm:$0xff] %v220
    %223 = vst [vmem:[#allocation8 + $0x8] sm:$0xff] %v221
    // Predicated region
    $region30: #{tpu_custom_call.1} parent=1 // pred_check
      _
    $region31: #{tpu_custom_call.1} parent=1 // pred_check_branch
      %225 = sbr.rel (0) target = $region33
    $region32: #{tpu_custom_call.1} parent=1 // pred_region
      %s227 = ssub.s32 256, 256
      %228 = vsyncadd [#allocation4], %s227
      %s229 = sshll.u32 [#allocation8], 4
      %s230 = int_to_ptr.vmem [resolvable:$true] %s229
      %235 = dma.vmem_to_hbm [thread:$0]  %s230, 256, %s4, [#allocation4], 128, 128, 8
    $region33: #{tpu_custom_call.1} parent=1 // pred_fallthru
      _
    // Predicated region
    $region34: #{tpu_custom_call.1} parent=1 // pred_check
      _
    $region35: #{tpu_custom_call.1} parent=1 // pred_check_branch
      %237 = sbr.rel (0) target = $region37
    $region36: #{tpu_custom_call.1} parent=1 // pred_region
      %238 = dma.done [#allocation4], 256
    $region37: #{tpu_custom_call.1} parent=1 // pred_fallthru
      _
    %239 = vsyncpa [#allocation3], 1
    %240 = vsyncpa [#allocation6], 1
    %241 = vsyncpa [#allocation4], 1

</llo_original>
